<compile_context>
chip_gen: v7x
topology: tpu7x:2x2x1
jax: 0.10.0
libtpu: 0.0.40
codegen_flags: <defaults>
</compile_context>

<pallas_src>
from typing import NamedTuple

import jax
import jax.numpy as jnp
from jax.experimental import pallas as pl
from jax.experimental.pallas import tpu as pltpu


OUT_W = 128  # lane-dense width for the 1-wide predictor output


def _round_up(n, m):
    return ((n + m - 1) // m) * m


def _pick_tile(n):
    # Prefer large row tiles (fills the 256-row MXU on v6e/v7x, amortizes the finalize),
    # but keep >= 2 row tiles so the "parallel" axis can shard across v7x's two TCs.
    for t in (512, 256, 128):
        if _round_up(n, t) // t >= 2:
            return t
    return 128


# --------------------------------------------------------------------------------------
# Kernels
# --------------------------------------------------------------------------------------
def _sage_layer_kernel(a_ref, dinv_ref, h_ref, w_ref, b_ref, o_ref):
    """One SAGEConv('gcn') layer row-tile: out = relu((((A+I)@H) * dinv) @ W + b)."""
    a = a_ref[...].astype(jnp.bfloat16)                      # int8 {0,1,2} -> bf16 (exact)
    agg = jnp.dot(a, h_ref[...], preferred_element_type=jnp.float32) * dinv_ref[...]
    h = jnp.dot(agg.astype(jnp.bfloat16), w_ref[...],
                preferred_element_type=jnp.float32) + b_ref[...]
    # dropout(p=0.2) -> identity in eval mode
    o_ref[...] = jnp.maximum(h, 0.0).astype(o_ref.dtype)


def _sage_mlp_kernel(a_ref, dinv_ref, h_ref, w2_ref, wm1_ref, const_ref, o_ref):
    """SAGEConv layer 2 + fused MLPPredictor (eval).

    const_ref rows: 0 = b2, 1 = bm1, 2 = bn_scale * wm2 (folded BN), 3[0] = bn_shift@wm2 + bm2.
    """
    h2_dim = w2_ref.shape[1]
    m_pad = wm1_ref.shape[1]

    a = a_ref[...].astype(jnp.bfloat16)
    agg = jnp.dot(a, h_ref[...], preferred_element_type=jnp.float32) * dinv_ref[...]

    h2 = jnp.dot(agg.astype(jnp.bfloat16), w2_ref[...],
                 preferred_element_type=jnp.float32) + const_ref[0:1, :h2_dim]
    h2 = jnp.maximum(h2, 0.0)                                # SAGEConv-2 ReLU; dropout = identity

    z = jnp.dot(h2.astype(jnp.bfloat16), wm1_ref[...],
                preferred_element_type=jnp.float32) + const_ref[1:2, :m_pad]
    z = jnp.maximum(z, 0.0)                                  # MLP ReLU

    # BatchNorm1d (eval) folded into the final 1-wide linear:
    #   logits = relu(z) @ (bn_scale * wm2) + (bn_shift @ wm2 + bm2)
    logits = jnp.sum(z * const_ref[2:3, :m_pad], axis=-1, keepdims=True) + const_ref[3:4, 0:1]

    sig = pl.reciprocal(1.0 + jnp.exp(-logits), approx=True)  # Sigmoid on the EUP path
    o_ref[...] = jnp.broadcast_to(sig, o_ref.shape)           # lane-dense (TM, 128) store


# --------------------------------------------------------------------------------------
# Host-side graph prep (one-time, hoisted out of the per-call forward path)
# --------------------------------------------------------------------------------------
class GraphData(NamedTuple):
    a_p: jax.Array      # (n_pad, n_pad) int8   (A + I), entries {0,1,2}
    dinv_p: jax.Array   # (n_pad, 1)     f32    1 / (deg + 1)
    n: int
    n_pad: int
    tile: int


def prepare_graph(adj, *, tile=None):
    """adj: (N, N) 0/1 float adjacency WITH self-loops (dgl.add_self_loop applied)."""
    N = adj.shape[0]
    if tile is None:
        tile = _pick_tile(N)
    n_pad = _round_up(N, tile)

    idx = jnp.arange(N)
    a_plus = adj.at[idx, idx].add(1.0)               # (A + I): DGL 'gcn' adds dst feature again
    deg = jnp.sum(adj, axis=1, keepdims=True)        # in-degree incl. self-loop
    dinv = 1.0 / (deg + 1.0)                         # SAGEConv 'gcn' divisor

    a_p = jnp.zeros((n_pad, n_pad), jnp.int8).at[:N, :N].set(a_plus.astype(jnp.int8))
    dinv_p = jnp.ones((n_pad, 1), jnp.float32).at[:N, :].set(dinv)
    return GraphData(a_p, dinv_p, N, n_pad, tile)


# --------------------------------------------------------------------------------------
# Forward
# --------------------------------------------------------------------------------------
def graphsage_forward(graph: GraphData, features, params):
    """Returns (N, 1) float32 sigmoid predictions."""
    a_p, dinv_p, N, n_pad, tile = graph
    f_in = features.shape[1]
    f_pad = _round_up(f_in, 128)

    w1, b1, w2, b2, wm1, bm1, gamma, beta, mean, var, wm2, bm2 = params
    h1_dim = w1.shape[1]
    h2_dim = w2.shape[1]
    m = wm1.shape[1]
    m_pad = _round_up(m, 128)
    cw = max(m_pad, _round_up(h2_dim, 128))

    # ---- small host-side prep (O(N*F) feature pad + O(hidden^2) weight pad/cast) ----
    x_p = jnp.zeros((n_pad, f_pad), jnp.bfloat16).at[:N, :f_in].set(
        features.astype(jnp.bfloat16))
    w1_p = jnp.zeros((f_pad, h1_dim), jnp.bfloat16).at[:f_in, :].set(w1.astype(jnp.bfloat16))
    w2_b = w2.astype(jnp.bfloat16)
    wm1_p = jnp.zeros((h2_dim, m_pad), jnp.bfloat16).at[:, :m].set(wm1.astype(jnp.bfloat16))

    # Fold BatchNorm1d (eval) into the final 1-wide linear.
    bn_scale = gamma * jax.lax.rsqrt(var + 1e-5)             # (1, m)
    bn_shift = beta - mean * bn_scale                        # (1, m)
    w_eff = bn_scale[0] * wm2[:, 0]                          # (m,)
    b_eff = jnp.dot(bn_shift[0], wm2[:, 0]) + bm2[0, 0]      # scalar

    consts = jnp.zeros((8, cw), jnp.float32)
    consts = consts.at[0, :h2_dim].set(b2[0])
    consts = consts.at[1, :m].set(bm1[0])
    consts = consts.at[2, :m].set(w_eff)
    consts = consts.at[3, 0].set(b_eff)

    grid = (n_pad // tile,)
    cparams = pltpu.CompilerParams(
        dimension_semantics=("parallel",),
        vmem_limit_bytes=48 * 1024 * 1024,   # <= 64 MiB physical on v7x, plenty on v5e/v6e
    )

    a_spec = pl.BlockSpec((tile, n_pad), lambda i: (i, 0))   # full-K int8 adjacency slab
    dinv_spec = pl.BlockSpec((tile, 1), lambda i: (i, 0))

    def resident(r, c):                                      # constant index -> fetched once
        return pl.BlockSpec((r, c), lambda i: (0, 0))

    # Rough VMEM budget check for the full-K / resident-H schedule.
    vmem_est = (2 * tile * n_pad                              # double-buffered int8 A slab
                + 2 * n_pad * max(f_pad, h1_dim)              # resident H (bf16)
                + 2 * 2 * tile * max(h1_dim, OUT_W) * 4)      # double-buffered outputs (f32 bound)
    # NOTE: for very large graphs re-introduce a K grid axis with an f32 accumulator
    # (previous revision) instead of the resident-H schedule.
    assert vmem_est < 40 * 1024 * 1024, "graph too large for the full-K resident-H schedule"

    # ---- SAGE layer 1 ----
    h1 = pl.pallas_call(
        _sage_layer_kernel,
        out_shape=jax.ShapeDtypeStruct((n_pad, h1_dim), jnp.bfloat16),
        grid=grid,
        in_specs=[a_spec, dinv_spec,
                  resident(n_pad, f_pad),
                  resident(f_pad, h1_dim),
                  resident(1, h1_dim)],
        out_specs=pl.BlockSpec((tile, h1_dim), lambda i: (i, 0)),
        compiler_params=cparams,
    )(a_p, dinv_p, x_p, w1_p, b1)

    # ---- SAGE layer 2 + fused MLP predictor ----
    out = pl.pallas_call(
        _sage_mlp_kernel,
        out_shape=jax.ShapeDtypeStruct((n_pad, OUT_W), jnp.float32),
        grid=grid,
        in_specs=[a_spec, dinv_spec,
                  resident(n_pad, h1_dim),
                  resident(h1_dim, h2_dim),
                  resident(h2_dim, m_pad),
                  resident(8, cw)],
        out_specs=pl.BlockSpec((tile, OUT_W), lambda i: (i, 0)),
        compiler_params=cparams,
    )(a_p, dinv_p, h1, w2_b, wm1_p, consts)

    return out[:N, :1]


# --------------------------------------------------------------------------------------
# Parameters & reference
# --------------------------------------------------------------------------------------
def init_params(key, gcn_in, gcn_hid, gcn_out, mlp_hid):
    ks = jax.random.split(key, 4)

    def lin(k, fan_in, fan_out):
        bound = 1.0 / (fan_in ** 0.5)
        kw, kb = jax.random.split(k)
        w = jax.random.uniform(kw, (fan_in, fan_out), jnp.float32, -bound, bound)
        b = jax.random.uniform(kb, (1, fan_out), jnp.float32, -bound, bound)
        return w, b

    w1, b1 = lin(ks[0], gcn_in, gcn_hid)      # SAGEConv-1 fc_neigh (+bias)
    w2, b2 = lin(ks[1], gcn_hid, gcn_out)     # SAGEConv-2 fc_neigh (+bias)
    wm1, bm1 = lin(ks[2], gcn_out, mlp_hid)   # MLP Linear 1
    wm2, bm2 = lin(ks[3], mlp_hid, 1)         # MLP Linear 2 (n_classes=2 -> 1 sigmoid out)
    gamma = jnp.ones((1, mlp_hid), jnp.float32)
    beta = jnp.zeros((1, mlp_hid), jnp.float32)
    running_mean = jnp.zeros((1, mlp_hid), jnp.float32)
    running_var = jnp.ones((1, mlp_hid), jnp.float32)
    return (w1, b1, w2, b2, wm1, bm1, gamma, beta, running_mean, running_var, wm2, bm2)


def reference(adj, features, params):
    """Pure-JAX reference with the same bf16 operand precision as the kernel."""
    w1, b1, w2, b2, wm1, bm1, gamma, beta, mean, var, wm2, bm2 = params
    bf = jnp.bfloat16
    N = adj.shape[0]
    idx = jnp.arange(N)
    a_plus = adj.at[idx, idx].add(1.0).astype(bf)            # entries {0,1,2} exact in bf16
    deg = jnp.sum(adj, axis=1, keepdims=True)
    dinv = 1.0 / (deg + 1.0)

    agg = jnp.dot(a_plus, features.astype(bf), preferred_element_type=jnp.float32) * dinv
    h1 = jnp.maximum(jnp.dot(agg.astype(bf), w1.astype(bf),
                             preferred_element_type=jnp.float32) + b1, 0.0).astype(bf)
    agg2 = jnp.dot(a_plus, h1, preferred_element_type=jnp.float32) * dinv
    h2 = jnp.maximum(jnp.dot(agg2.astype(bf), w2.astype(bf),
                             preferred_element_type=jnp.float32) + b2, 0.0)
    z = jnp.maximum(jnp.dot(h2.astype(bf), wm1.astype(bf),
                            preferred_element_type=jnp.float32) + bm1, 0.0)
    z = (z - mean) * jax.lax.rsqrt(var + 1e-5) * gamma + beta
    logits = jnp.dot(z, wm2, precision=jax.lax.Precision.HIGHEST) + bm2
    return jax.nn.sigmoid(logits)


# --------------------------------------------------------------------------------------
if __name__ == "__main__":
    N = 256           # number of graph nodes
    GCN_IN = 32       # gcn_in_size
    GCN_HID = 128     # gcn_hid_size
    GCN_OUT = 128     # gcn_out_size
    MLP_HID = 200     # mlp_hid_size (padded to 256 inside the wrapper)

    key = jax.random.PRNGKey(0)
    k_adj, k_feat, k_par = jax.random.split(key, 3)

    # Random directed graph + self loops (dgl.add_self_loop).
    adj = (jax.random.uniform(k_adj, (N, N)) < 0.05).astype(jnp.float32)
    adj = jnp.maximum(adj, jnp.eye(N, dtype=jnp.float32))

    features = jax.random.normal(k_feat, (N, GCN_IN), jnp.float32)
    params = init_params(k_par, GCN_IN, GCN_HID, GCN_OUT, MLP_HID)

    graph = prepare_graph(adj)                     # one-time O(N^2) prep, out of forward path
    out = graphsage_forward(graph, features, params)
    out = jax.block_until_ready(out)
    assert out.shape == (N, 1)

    ref = reference(adj, features, params)
    err = float(jnp.max(jnp.abs(out - ref)))
    assert err < 2e-2, f"max abs err vs reference: {err}"
    print("KERNEL_OK")
</pallas_src>

<mosaic_0001>
module attributes {stable_mosaic.version = 11 : i64} {
  func.func @_sage_layer_kernel(%arg0: i32, %arg1: memref<128x256xi8, #tpu.memory_space<vmem>>, %arg2: memref<128x1xf32, #tpu.memory_space<vmem>>, %arg3: memref<256x128xbf16, #tpu.memory_space<vmem>>, %arg4: memref<128x128xbf16, #tpu.memory_space<vmem>>, %arg5: memref<1x128xf32, #tpu.memory_space<vmem>>, %arg6: memref<128x128xbf16, #tpu.memory_space<vmem>>) attributes {dimension_semantics = [#tpu.dimension_semantics<parallel>], iteration_bounds = array<i64: 2>, scalar_prefetch = 0 : i64, scratch_operands = 0 : i64, tpu.core_type = #tpu.core_type<tc>, window_params = [{transform_indices = @transform_0, window_bounds = array<i64: 128, 256>}, {transform_indices = @transform_1, window_bounds = array<i64: 128, 1>}, {pipeline_mode = #tpu.pipeline_mode<synchronous>, transform_indices = @transform_2, window_bounds = array<i64: 256, 128>}, {pipeline_mode = #tpu.pipeline_mode<synchronous>, transform_indices = @transform_3, window_bounds = array<i64: 128, 128>}, {pipeline_mode = #tpu.pipeline_mode<synchronous>, transform_indices = @transform_4, window_bounds = array<i64: 1, 128>}, {transform_indices = @transform_5, window_bounds = array<i64: 128, 128>}]} {
    %c0 = arith.constant 0 : index
    %c0_0 = arith.constant 0 : index
    %0 = vector.load %arg1[%c0, %c0_0] : memref<128x256xi8, #tpu.memory_space<vmem>>, vector<128x256xi8>
    %1 = arith.sitofp %0 : vector<128x256xi8> to vector<128x256xbf16>
    %c0_1 = arith.constant 0 : index
    %c0_2 = arith.constant 0 : index
    %2 = vector.load %arg3[%c0_1, %c0_2] : memref<256x128xbf16, #tpu.memory_space<vmem>>, vector<256x128xbf16>
    %cst = arith.constant dense<0.000000e+00> : vector<128x128xf32>
    %3 = tpu.matmul %1, %2, %cst {dimension_numbers = #tpu.dot_dimension_numbers<[1], [0], [0], [1], [0, 0, 1, 1], [], []>} : vector<128x256xbf16>, vector<256x128xbf16>, vector<128x128xf32> -> vector<128x128xf32>
    %c0_3 = arith.constant 0 : index
    %c0_4 = arith.constant 0 : index
    %4 = vector.load %arg2[%c0_3, %c0_4] : memref<128x1xf32, #tpu.memory_space<vmem>>, vector<128x1xf32>
    %5 = vector.broadcast %4 : vector<128x1xf32> to vector<128x128xf32>
    %6 = arith.mulf %3, %5 : vector<128x128xf32>
    %7 = arith.truncf %6 : vector<128x128xf32> to vector<128x128xbf16>
    %c0_5 = arith.constant 0 : index
    %c0_6 = arith.constant 0 : index
    %8 = vector.load %arg4[%c0_5, %c0_6] : memref<128x128xbf16, #tpu.memory_space<vmem>>, vector<128x128xbf16>
    %cst_7 = arith.constant dense<0.000000e+00> : vector<128x128xf32>
    %9 = tpu.matmul %7, %8, %cst_7 {dimension_numbers = #tpu.dot_dimension_numbers<[1], [0], [0], [1], [0, 0, 1, 1], [], []>} : vector<128x128xbf16>, vector<128x128xbf16>, vector<128x128xf32> -> vector<128x128xf32>
    %c0_8 = arith.constant 0 : index
    %c0_9 = arith.constant 0 : index
    %10 = vector.load %arg5[%c0_8, %c0_9] : memref<1x128xf32, #tpu.memory_space<vmem>>, vector<1x128xf32>
    %11 = vector.broadcast %10 : vector<1x128xf32> to vector<128x128xf32>
    %12 = arith.addf %9, %11 : vector<128x128xf32>
    %cst_10 = arith.constant 0.000000e+00 : f32
    %13 = vector.broadcast %cst_10 : f32 to vector<128x128xf32>
    %14 = arith.maximumf %12, %13 : vector<128x128xf32>
    %15 = arith.truncf %14 : vector<128x128xf32> to vector<128x128xbf16>
    %c0_11 = arith.constant 0 : index
    %c0_12 = arith.constant 0 : index
    %16 = vector.load %arg6[%c0_11, %c0_12] : memref<128x128xbf16, #tpu.memory_space<vmem>>, vector<128x128xbf16>
    tpu.vector_store %arg6[%c0_11, %c0_12], %15 {strides = array<i32>} : memref<128x128xbf16, #tpu.memory_space<vmem>>, vector<128x128xbf16>,
    return
  }
  func.func @transform_0(%arg0: i32) -> (i32, i32) {
    %c0_i32 = arith.constant 0 : i32
    %c0_i32_0 = arith.constant 0 : i32
    return %arg0, %c0_i32 : i32, i32
  }
  func.func @transform_1(%arg0: i32) -> (i32, i32) {
    %c0_i32 = arith.constant 0 : i32
    %c0_i32_0 = arith.constant 0 : i32
    return %arg0, %c0_i32 : i32, i32
  }
  func.func @transform_2(%arg0: i32) -> (i32, i32) {
    %c0_i32 = arith.constant 0 : i32
    %c0_i32_0 = arith.constant 0 : i32
    %c0_i32_1 = arith.constant 0 : i32
    return %c0_i32, %c0_i32_0 : i32, i32
  }
  func.func @transform_3(%arg0: i32) -> (i32, i32) {
    %c0_i32 = arith.constant 0 : i32
    %c0_i32_0 = arith.constant 0 : i32
    %c0_i32_1 = arith.constant 0 : i32
    return %c0_i32, %c0_i32_0 : i32, i32
  }
  func.func @transform_4(%arg0: i32) -> (i32, i32) {
    %c0_i32 = arith.constant 0 : i32
    %c0_i32_0 = arith.constant 0 : i32
    %c0_i32_1 = arith.constant 0 : i32
    return %c0_i32, %c0_i32_0 : i32, i32
  }
  func.func @transform_5(%arg0: i32) -> (i32, i32) {
    %c0_i32 = arith.constant 0 : i32
    %c0_i32_0 = arith.constant 0 : i32
    return %arg0, %c0_i32 : i32, i32
  }
}

</mosaic_0001>

<llo_original>
// kernel: tpu_custom_call.1
$region0: #{tpu_custom_call.1}
  #allocation0 [shape = 'u32[]', space=smem, size = 0x4, offset = 0x4, fixed_abs, tag = 'smem constant byte address 0x4 - core index']
  #allocation1 [shape = 'u32[144,128]{1,0:T(1,128)}', space=vmem, size = 0x12000, scoped, tag = 'internal scratch']
  %s0 = inlined_call_operand.vmem [shape: s8[256,256], index: 0, kind: input, shape index: {}]
  %s1 = inlined_call_operand.vmem [shape: f32[256,1], index: 1, kind: input, shape index: {}]
  %s2 = inlined_call_operand.vmem [shape: bf16[256,128], index: 2, kind: input, shape index: {}]
  %s3 = inlined_call_operand.hbm [shape: bf16[128,128], index: 3, kind: input, shape index: {}]
  %s4 = inlined_call_operand.vmem [shape: f32[1,128], index: 4, kind: input, shape index: {}]
  %s5 = inlined_call_operand.hbm [shape: bf16[256,128], index: 5, kind: output, shape index: {}]
  %s6 = sld [smem:[#allocation0]]
  $region57: #{tpu_custom_call.1} parent=0
    _
  %s8 = ssub.s32 1, %s6
  %s9 = scalar_select 0, %s8, %s6
  $region1: #{tpu_custom_call.1} parent=0
    #allocation2 [shape = 'u8[32768]{0}', space=vmem, size = 0x8000, scoped, tag = 'input window, operand 3, single buffered']
    #allocation3 [shape = 's32[2]{0}', space=sflag, size = 0x8, scoped, tag = 'scoped memory for tpu_custom_call.1']
    #allocation4 [shape = 's32[2]{0}', space=sflag, size = 0x8, scoped, tag = 'scoped memory for tpu_custom_call.1']
    #allocation5 [shape = 'u8[65536]{0}', space=vmem, size = 0x10000, scoped, tag = 'output window, operand 0']
    %10 = vsyncpa [#allocation3], 0
    %11 = vsyncpa [#allocation4], 0
    %s12 = scalar_lea.sflag [#allocation4], 1
    %13 = vsyncpa %s12, 0
    loop: start=0, step=1, limit=4
    $region2: #{tpu_custom_call.1} parent=1 // loop_pre_header
      _
    $region3: #{tpu_custom_call.1} parent=1 // loop_header
      %s15 = sphi 0, %s19
      %p16 = scmp.ge.s32.totalorder %s15, 4
      %s25 = sphi 0, %s27
      %s28 = sphi 0, %s25
      %s29 = sphi 0, %s28
      %s45 = sphi 0, %s29
      %s51 = sphi 0, %s53
      %s54 = sphi 0, %s51
      %s55 = sphi 0, %s54
      %s71 = sphi 0, %s55
      %s75 = sphi 0, %s75
      %s77 = sphi 0, %s75
      %s78 = sphi 0, %s77
      %s92 = sphi 0, %s78
      %s96 = sphi 0, %s96
      %s98 = sphi 0, %s96
      %s99 = sphi 0, %s98
      %s113 = sphi 0, %s99
      %s117 = sphi 0, %s117
      %s119 = sphi 0, %s117
      %s120 = sphi 0, %s119
      %s134 = sphi 0, %s120
      %s140 = sphi 0, %s142
      %s143 = sphi 0, %s140
      %s144 = sphi 0, %s143
      %s160 = sphi 0, %s144
    $region4: #{tpu_custom_call.1} parent=1 // loop_header_branch
      %18 = sbr.rel (%p16) target = $region8
    $region5: #{tpu_custom_call.1} parent=1 // loop_body
      %s20 = ssub.s32 %s15, 1
      %s21 = ssub.s32 %s15, 2
      %s22 = sadd.s32 %s15, 1
      %s23 = ssub.s32 %s15, %s22
      %p24 = scmp.eq.s32.totalorder %s23, 0
      %s26 = sadd.s32 %s25, 1
      %s27 = scalar_select %p24, %s25, %s26
      %p30 = pneg %p24
      %p31 = scmp.eq.s32.totalorder %s15, 1
      %p32 = por %p30, %p31
      %p33 = scmp.ne.s32.totalorder %s25, %s28
      %p34 = scmp.eq.s32.totalorder %s15, 0
      %p35 = por %p33, %p34
      %p36 = scmp.ne.s32.totalorder %s25, %s28
      %p37 = scmp.eq.s32.totalorder %s20, 1
      %p38 = por %p36, %p37
      %p39 = scmp.ne.s32.totalorder %s28, %s29
      %p40 = scmp.eq.s32.totalorder %s20, 0
      %p41 = por %p39, %p40
      %p42 = scmp.ne.s32.totalorder %s28, %s29
      %p43 = scmp.eq.s32.totalorder %s21, 1
      %p44 = por %p42, %p43
      %p46 = scmp.ne.s32.totalorder %s29, %s45
      %p47 = scmp.eq.s32.totalorder %s21, 0
      %p48 = por %p46, %p47
      %s49 = ssub.s32 %s15, %s22
      %p50 = scmp.eq.s32.totalorder %s49, 0
      %s52 = sadd.s32 %s51, 1
      %s53 = scalar_select %p50, %s51, %s52
      %p56 = pneg %p50
      %p57 = scmp.eq.s32.totalorder %s15, 1
      %p58 = por %p56, %p57
      %p59 = scmp.ne.s32.totalorder %s51, %s54
      %p60 = scmp.eq.s32.totalorder %s15, 0
      %p61 = por %p59, %p60
      %p62 = scmp.ne.s32.totalorder %s51, %s54
      %p63 = scmp.eq.s32.totalorder %s20, 1
      %p64 = por %p62, %p63
      %p65 = scmp.ne.s32.totalorder %s54, %s55
      %p66 = scmp.eq.s32.totalorder %s20, 0
      %p67 = por %p65, %p66
      %p68 = scmp.ne.s32.totalorder %s54, %s55
      %p69 = scmp.eq.s32.totalorder %s21, 1
      %p70 = por %p68, %p69
      %p72 = scmp.ne.s32.totalorder %s55, %s71
      %p73 = scmp.eq.s32.totalorder %s21, 0
      %p74 = por %p72, %p73
      %s76 = sadd.s32 %s75, 1
      %p79 = scmp.eq.s32.totalorder %s15, 1
      %p80 = scmp.ne.s32.totalorder %s75, %s77
      %p81 = scmp.eq.s32.totalorder %s15, 0
      %p82 = por %p80, %p81
      %p83 = scmp.ne.s32.totalorder %s75, %s77
      %p84 = scmp.eq.s32.totalorder %s20, 1
      %p85 = por %p83, %p84
      %p86 = scmp.ne.s32.totalorder %s77, %s78
      %p87 = scmp.eq.s32.totalorder %s20, 0
      %p88 = por %p86, %p87
      %p89 = scmp.ne.s32.totalorder %s77, %s78
      %p90 = scmp.eq.s32.totalorder %s21, 1
      %p91 = por %p89, %p90
      %p93 = scmp.ne.s32.totalorder %s78, %s92
      %p94 = scmp.eq.s32.totalorder %s21, 0
      %p95 = por %p93, %p94
      %s97 = sadd.s32 %s96, 1
      %p100 = scmp.eq.s32.totalorder %s15, 1
      %p101 = scmp.ne.s32.totalorder %s96, %s98
      %p102 = scmp.eq.s32.totalorder %s15, 0
      %p103 = por %p101, %p102
      %p104 = scmp.ne.s32.totalorder %s96, %s98
      %p105 = scmp.eq.s32.totalorder %s20, 1
      %p106 = por %p104, %p105
      %p107 = scmp.ne.s32.totalorder %s98, %s99
      %p108 = scmp.eq.s32.totalorder %s20, 0
      %p109 = por %p107, %p108
      %p110 = scmp.ne.s32.totalorder %s98, %s99
      %p111 = scmp.eq.s32.totalorder %s21, 1
      %p112 = por %p110, %p111
      %p114 = scmp.ne.s32.totalorder %s99, %s113
      %p115 = scmp.eq.s32.totalorder %s21, 0
      %p116 = por %p114, %p115
      %s118 = sadd.s32 %s117, 1
      %p121 = scmp.eq.s32.totalorder %s15, 1
      %p122 = scmp.ne.s32.totalorder %s117, %s119
      %p123 = scmp.eq.s32.totalorder %s15, 0
      %p124 = por %p122, %p123
      %p125 = scmp.ne.s32.totalorder %s117, %s119
      %p126 = scmp.eq.s32.totalorder %s20, 1
      %p127 = por %p125, %p126
      %p128 = scmp.ne.s32.totalorder %s119, %s120
      %p129 = scmp.eq.s32.totalorder %s20, 0
      %p130 = por %p128, %p129
      %p131 = scmp.ne.s32.totalorder %s119, %s120
      %p132 = scmp.eq.s32.totalorder %s21, 1
      %p133 = por %p131, %p132
      %p135 = scmp.ne.s32.totalorder %s120, %s134
      %p136 = scmp.eq.s32.totalorder %s21, 0
      %p137 = por %p135, %p136
      %s138 = ssub.s32 %s15, %s22
      %p139 = scmp.eq.s32.totalorder %s138, 0
      %s141 = sadd.s32 %s140, 1
      %s142 = scalar_select %p139, %s140, %s141
      %p145 = pneg %p139
      %p146 = scmp.eq.s32.totalorder %s15, 1
      %p147 = por %p145, %p146
      %p148 = scmp.ne.s32.totalorder %s140, %s143
      %p149 = scmp.eq.s32.totalorder %s15, 0
      %p150 = por %p148, %p149
      %p151 = scmp.ne.s32.totalorder %s140, %s143
      %p152 = scmp.eq.s32.totalorder %s20, 1
      %p153 = por %p151, %p152
      %p154 = scmp.ne.s32.totalorder %s143, %s144
      %p155 = scmp.eq.s32.totalorder %s20, 0
      %p156 = por %p154, %p155
      %p157 = scmp.ne.s32.totalorder %s143, %s144
      %p158 = scmp.eq.s32.totalorder %s21, 1
      %p159 = por %p157, %p158
      %p161 = scmp.ne.s32.totalorder %s144, %s160
      %p162 = scmp.eq.s32.totalorder %s21, 0
      %p163 = por %p161, %p162
      %p164 = scmp.le.s32.totalorder 1, %s15
      %p165 = scmp.lt.s32.totalorder %s15, 3
      %p166 = pnand %p164, %p165
      %p167 = pneg %p166
      // Predicated region
      $region9: #{tpu_custom_call.1} parent=5 // pred_check
        _
      $region10: #{tpu_custom_call.1} parent=5 // pred_check_branch
        %169 = sbr.rel (%p166) target = $region12
      $region11: #{tpu_custom_call.1} parent=5 // pred_region
        %s170 = ssub.s32 %s15, 1
        // Predicated region
        $region13: #{tpu_custom_call.1} parent=11 // pred_check
          %p171 = pneg %p88
        $region14: #{tpu_custom_call.1} parent=11 // pred_check_branch
          %173 = sbr.rel (%p171) target = $region16
        $region15: #{tpu_custom_call.1} parent=11 // pred_region
          _
        $region16: #{tpu_custom_call.1} parent=11 // pred_fallthru
          _
        // Predicated region
        $region17: #{tpu_custom_call.1} parent=11 // pred_check
          %p174 = pneg %p109
        $region18: #{tpu_custom_call.1} parent=11 // pred_check_branch
          %176 = sbr.rel (%p174) target = $region20
        $region19: #{tpu_custom_call.1} parent=11 // pred_region
          %s178 = ssub.s32 1024, 1024
          %179 = vsyncadd [#allocation3], %s178
          %s180 = sshll.u32 [#allocation2], 4
          %s181 = int_to_ptr.vmem [resolvable:$true] %s180
          %186 = dma.hbm_to_vmem [thread:$0]  %s3, 1024, %s181, [#allocation3], 64, 64, 4
        $region20: #{tpu_custom_call.1} parent=11 // pred_fallthru
          _
        // Predicated region
        $region21: #{tpu_custom_call.1} parent=11 // pred_check
          %p187 = pneg %p130
        $region22: #{tpu_custom_call.1} parent=11 // pred_check_branch
          %189 = sbr.rel (%p187) target = $region24
        $region23: #{tpu_custom_call.1} parent=11 // pred_region
          _
        $region24: #{tpu_custom_call.1} parent=11 // pred_fallthru
          _
      $region12: #{tpu_custom_call.1} parent=5 // pred_fallthru
        _
      %p190 = scmp.lt.s32.totalorder %s15, 2
      // Predicated region
      $region25: #{tpu_custom_call.1} parent=5 // pred_check
        %p191 = pneg %p190
      $region26: #{tpu_custom_call.1} parent=5 // pred_check_branch
        %193 = sbr.rel (%p191) target = $region28
      $region27: #{tpu_custom_call.1} parent=5 // pred_region
        // Predicated region
        $region29: #{tpu_custom_call.1} parent=27 // pred_check
          %p194 = pneg %p35
        $region30: #{tpu_custom_call.1} parent=27 // pred_check_branch
          %196 = sbr.rel (%p194) target = $region32
        $region31: #{tpu_custom_call.1} parent=27 // pred_region
          %s197 = smul.u32 4, %s15
          %p198 = scmp.lt.s32.totalorder %s197, 7
          %s199 = scalar_select %p198, %s197, 7
          %s200 = smul.addr %s199, 2
          %s201 = smul.addr %s200, 8
          %s202 = scalar_lea.vmem %s0, %s201
          %s203 = smul.u32 4, %s15
        $region32: #{tpu_custom_call.1} parent=27 // pred_fallthru
          _
        // Predicated region
        $region33: #{tpu_custom_call.1} parent=27 // pred_check
          %p204 = pneg %p61
        $region34: #{tpu_custom_call.1} parent=27 // pred_check_branch
          %206 = sbr.rel (%p204) target = $region36
        $region35: #{tpu_custom_call.1} parent=27 // pred_region
          %s207 = smul.u32 16, %s15
          %p208 = scmp.lt.s32.totalorder %s207, 31
          %s209 = scalar_select %p208, %s207, 31
          %s210 = smul.addr %s209, 8
          %s211 = scalar_lea.vmem %s1, %s210
          %s212 = smul.u32 16, %s15
        $region36: #{tpu_custom_call.1} parent=27 // pred_fallthru
          _
      $region28: #{tpu_custom_call.1} parent=5 // pred_fallthru
        _
      %p213 = scmp.le.s32.totalorder 1, %s15
      %p214 = scmp.lt.s32.totalorder %s15, 3
      %p215 = pnand %p213, %p214
      %p216 = pneg %p215
      // Predicated region
      $region37: #{tpu_custom_call.1} parent=5 // pred_check
        _
      $region38: #{tpu_custom_call.1} parent=5 // pred_check_branch
        %218 = sbr.rel (%p215) target = $region40
      $region39: #{tpu_custom_call.1} parent=5 // pred_region
        %s219 = ssub.s32 %s15, 1
        // Predicated region
        $region41: #{tpu_custom_call.1} parent=39 // pred_check
          %p220 = pneg %p109
        $region42: #{tpu_custom_call.1} parent=39 // pred_check_branch
          %222 = sbr.rel (%p220) target = $region44
        $region43: #{tpu_custom_call.1} parent=39 // pred_region
          %223 = dma.done [#allocation3], 1024
        $region44: #{tpu_custom_call.1} parent=39 // pred_fallthru
          _
        %s224 = smul.u32 4, %s20
        %p225 = scmp.lt.s32.totalorder %s224, 7
        %s226 = scalar_select %p225, %s224, 7
        %s227 = smul.addr %s226, 2
        %s228 = smul.addr %s227, 8
        %s229 = scalar_lea.vmem %s0, %s228
        %p230 = pneg %p41
        %p231 = pneg %p38
        %s232 = smul.u32 16, %s20
        %p233 = scmp.lt.s32.totalorder %s232, 31
        %s234 = scalar_select %p233, %s232, 31
        %s235 = smul.addr %s234, 8
        %s236 = scalar_lea.vmem %s1, %s235
        %p237 = pneg %p67
        %p238 = pneg %p64
        %p239 = pneg %p88
        %p240 = pneg %p85
        %p241 = pneg %p109
        %p242 = pneg %p106
        %p243 = pneg %p130
        %p244 = pneg %p127
        %p245 = pneg %p156
        %p246 = pneg %p153
        %s247 = sand.u32 %s143, 1
        %s248 = scalar_lea.sflag [#allocation4], %s247
        %s249 = sand.u32 %s143, 1
        %s250 = smul.addr %s249, 64
        %s251 = scalar_lea.vmem [#allocation5], %s250
        %s252 = smul.u32 4, %s20
        %p253 = scmp.lt.s32.totalorder %s252, 7
        %s254 = scalar_select %p253, %s252, 7
        %s255 = smul.addr %s254, 2
        %s256 = smul.addr %s255, 8
        %s257 = scalar_lea.vmem %s0, %s256
        %s258 = smul.u32 4, %s20
        %s259 = smul.u32 16, %s20
        %p260 = scmp.lt.s32.totalorder %s259, 31
        %s261 = scalar_select %p260, %s259, 31
        %s262 = smul.addr %s261, 8
        %s263 = scalar_lea.vmem %s1, %s262
        %s264 = smul.u32 16, %s20
        %s265 = smul.u32 16, %s20
        %v267 = vld [vmem:[%s257] sm:$0xff]
        %v268 = vld [vmem:[%s257 + $0x8] sm:$0xff]
        %v269 = vld [vmem:[%s257 + $0x10] sm:$0xff]
        %v270 = vld [vmem:[%s257 + $0x18] sm:$0xff]
        %v271 = vld [vmem:[%s257 + $0x20] sm:$0xff]
        %v272 = vld [vmem:[%s257 + $0x28] sm:$0xff]
        %v273 = vld [vmem:[%s257 + $0x30] sm:$0xff]
        %v274 = vld [vmem:[%s257 + $0x38] sm:$0xff]
        %v275 = vunpack.c.l.s8.bf16 %v267
        %v276 = vunpack.c.l.s8.bf16 %v268
        %v277 = vunpack.c.h.s8.bf16 %v267
        %v278 = vunpack.c.h.s8.bf16 %v268
        %v279 = vunpack.c.l.s8.bf16 %v269
        %v280 = vunpack.c.l.s8.bf16 %v270
        %v281 = vunpack.c.h.s8.bf16 %v269
        %v282 = vunpack.c.h.s8.bf16 %v270
        %v283 = vunpack.c.l.s8.bf16 %v271
        %v284 = vunpack.c.l.s8.bf16 %v272
        %v285 = vunpack.c.h.s8.bf16 %v271
        %v286 = vunpack.c.h.s8.bf16 %v272
        %v287 = vunpack.c.l.s8.bf16 %v273
        %v288 = vunpack.c.l.s8.bf16 %v274
        %v289 = vunpack.c.h.s8.bf16 %v273
        %v290 = vunpack.c.h.s8.bf16 %v274
        %v291 = vld [vmem:[%s2] sm:$0xf]
        %v292 = vld [vmem:[%s2 + $0x4] sm:$0xf]
        %v293 = vld [vmem:[%s2 + $0x8] sm:$0xf]
        %v294 = vld [vmem:[%s2 + $0xc] sm:$0xf]
        %v295 = vld [vmem:[%s2 + $0x10] sm:$0xf]
        %v296 = vld [vmem:[%s2 + $0x14] sm:$0xf]
        %v297 = vld [vmem:[%s2 + $0x18] sm:$0xf]
        %v298 = vld [vmem:[%s2 + $0x1c] sm:$0xf]
        %v299 = vld [vmem:[%s2 + $0x20] sm:$0xf]
        %v300 = vld [vmem:[%s2 + $0x24] sm:$0xf]
        %v301 = vld [vmem:[%s2 + $0x28] sm:$0xf]
        %v302 = vld [vmem:[%s2 + $0x2c] sm:$0xf]
        %v303 = vld [vmem:[%s2 + $0x30] sm:$0xf]
        %v304 = vld [vmem:[%s2 + $0x34] sm:$0xf]
        %v305 = vld [vmem:[%s2 + $0x38] sm:$0xf]
        %v306 = vld [vmem:[%s2 + $0x3c] sm:$0xf]
        %v307 = vld [vmem:[%s2 + $0x40] sm:$0xf]
        %v308 = vld [vmem:[%s2 + $0x44] sm:$0xf]
        %v309 = vld [vmem:[%s2 + $0x48] sm:$0xf]
        %v310 = vld [vmem:[%s2 + $0x4c] sm:$0xf]
        %v311 = vld [vmem:[%s2 + $0x50] sm:$0xf]
        %v312 = vld [vmem:[%s2 + $0x54] sm:$0xf]
        %v313 = vld [vmem:[%s2 + $0x58] sm:$0xf]
        %v314 = vld [vmem:[%s2 + $0x5c] sm:$0xf]
        %v315 = vld [vmem:[%s2 + $0x60] sm:$0xf]
        %v316 = vld [vmem:[%s2 + $0x64] sm:$0xf]
        %v317 = vld [vmem:[%s2 + $0x68] sm:$0xf]
        %v318 = vld [vmem:[%s2 + $0x6c] sm:$0xf]
        %v319 = vld [vmem:[%s2 + $0x70] sm:$0xf]
        %v320 = vld [vmem:[%s2 + $0x74] sm:$0xf]
        %v321 = vld [vmem:[%s2 + $0x78] sm:$0xf]
        %v322 = vld [vmem:[%s2 + $0x7c] sm:$0xf]
        %v355 = vunpack.c.l.b16 %v291
        %v356 = vunpack.c.l.b16 %v292
        %v357 = vunpack.c.l.b16 %v293
        %v358 = vunpack.c.l.b16 %v294
        %v359 = vunpack.c.l.b16 %v295
        %v360 = vunpack.c.l.b16 %v296
        %v361 = vunpack.c.l.b16 %v297
        %v362 = vunpack.c.l.b16 %v298
        %v363 = vunpack.c.l.b16 %v299
        %v364 = vunpack.c.l.b16 %v300
        %v365 = vunpack.c.l.b16 %v301
        %v366 = vunpack.c.l.b16 %v302
        %v367 = vunpack.c.l.b16 %v303
        %v368 = vunpack.c.l.b16 %v304
        %v369 = vunpack.c.l.b16 %v305
        %v370 = vunpack.c.l.b16 %v306
        %v371 = vunpack.c.l.b16 %v307
        %v372 = vunpack.c.l.b16 %v308
        %v373 = vunpack.c.l.b16 %v309
        %v374 = vunpack.c.l.b16 %v310
        %v375 = vunpack.c.l.b16 %v311
        %v376 = vunpack.c.l.b16 %v312
        %v377 = vunpack.c.l.b16 %v313
        %v378 = vunpack.c.l.b16 %v314
        %v379 = vunpack.c.l.b16 %v315
        %v380 = vunpack.c.l.b16 %v316
        %v381 = vunpack.c.l.b16 %v317
        %v382 = vunpack.c.l.b16 %v318
        %v383 = vunpack.c.l.b16 %v319
        %v384 = vunpack.c.l.b16 %v320
        %v385 = vunpack.c.l.b16 %v321
        %v386 = vunpack.c.l.b16 %v322
        %v387 = vpack.c.b16 %v356, %v355
        %v388 = vpack.c.b16 %v358, %v357
        %v389 = vpack.c.b16 %v360, %v359
        %v390 = vpack.c.b16 %v362, %v361
        %v391 = vpack.c.b16 %v364, %v363
        %v392 = vpack.c.b16 %v366, %v365
        %v393 = vpack.c.b16 %v368, %v367
        %v394 = vpack.c.b16 %v370, %v369
        %v395 = vpack.c.b16 %v372, %v371
        %v396 = vpack.c.b16 %v374, %v373
        %v397 = vpack.c.b16 %v376, %v375
        %v398 = vpack.c.b16 %v378, %v377
        %v399 = vpack.c.b16 %v380, %v379
        %v400 = vpack.c.b16 %v382, %v381
        %v401 = vpack.c.b16 %v384, %v383
        %v402 = vpack.c.b16 %v386, %v385
        %419 = vmatprep.subr.bf16.mxu0 0
        %420 = vmatpush1.bf16.msra.mxu0 %v387
        %421 = vmatprep.subr.bf16.mxu0 0
        %422 = vmatpush1.bf16.msra.mxu0 %v388
        %423 = vmatprep.subr.bf16.mxu0 0
        %424 = vmatpush1.bf16.msra.mxu0 %v389
        %425 = vmatprep.subr.bf16.mxu0 0
        %426 = vmatpush1.bf16.msra.mxu0 %v390
        %427 = vmatprep.subr.bf16.mxu0 0
        %428 = vmatpush1.bf16.msra.mxu0 %v391
        %429 = vmatprep.subr.bf16.mxu0 0
        %430 = vmatpush1.bf16.msra.mxu0 %v392
        %431 = vmatprep.subr.bf16.mxu0 0
        %432 = vmatpush1.bf16.msra.mxu0 %v393
        %433 = vmatprep.subr.bf16.mxu0 0
        %434 = vmatpush1.bf16.msra.mxu0 %v394
        %435 = vmatprep.subr.bf16.mxu0 0
        %436 = vmatpush1.bf16.msra.mxu0 %v395
        %437 = vmatprep.subr.bf16.mxu0 0
        %438 = vmatpush1.bf16.msra.mxu0 %v396
        %439 = vmatprep.subr.bf16.mxu0 0
        %440 = vmatpush1.bf16.msra.mxu0 %v397
        %441 = vmatprep.subr.bf16.mxu0 0
        %442 = vmatpush1.bf16.msra.mxu0 %v398
        %443 = vmatprep.subr.bf16.mxu0 0
        %444 = vmatpush1.bf16.msra.mxu0 %v399
        %445 = vmatprep.subr.bf16.mxu0 0
        %446 = vmatpush1.bf16.msra.mxu0 %v400
        %447 = vmatprep.subr.bf16.mxu0 0
        %448 = vmatpush1.bf16.msra.mxu0 %v401
        %449 = vmatprep.subr.bf16.mxu0 0
        %450 = vmatpush1.bf16.msra.mxu0 %v402
        %451 = vmatprep.mubr.bf16.mxu0 %v276
        %452 = vmatmul.mubr.bf16.gmra.mrb[0].mxu0 %v275
        %v453 = vpop.f32.mrb[0].mxu0
        %v454 = vadd.f32 0.0, %v453
        %v455 = vpop.f32.mrb[0].mxu0
        %v456 = vpop.f32.mrb[0].mxu0
        %v457 = vadd.f32 0.0, %v456
        %v458 = vpop.f32.mrb[0].mxu0
        %459 = vmatprep.mubr.bf16.mxu0 %v278
        %460 = vmatmul.mubr.bf16.gmra.mrb[0].mxu0 %v277
        %v461 = vpop.f32.mrb[0].mxu0
        %v462 = vadd.f32 0.0, %v461
        %v463 = vpop.f32.mrb[0].mxu0
        %v464 = vpop.f32.mrb[0].mxu0
        %v465 = vadd.f32 0.0, %v464
        %v466 = vpop.f32.mrb[0].mxu0
        %467 = vmatprep.mubr.bf16.mxu0 %v280
        %468 = vmatmul.mubr.bf16.gmra.mrb[0].mxu0 %v279
        %v469 = vpop.f32.mrb[0].mxu0
        %v470 = vadd.f32 0.0, %v469
        %v471 = vpop.f32.mrb[0].mxu0
        %v472 = vpop.f32.mrb[0].mxu0
        %v473 = vadd.f32 0.0, %v472
        %v474 = vpop.f32.mrb[0].mxu0
        %475 = vmatprep.mubr.bf16.mxu0 %v282
        %476 = vmatmul.mubr.bf16.gmra.mrb[0].mxu0 %v281
        %v477 = vpop.f32.mrb[0].mxu0
        %v478 = vadd.f32 0.0, %v477
        %v479 = vpop.f32.mrb[0].mxu0
        %v480 = vpop.f32.mrb[0].mxu0
        %v481 = vadd.f32 0.0, %v480
        %v482 = vpop.f32.mrb[0].mxu0
        %483 = vmatprep.mubr.bf16.mxu0 %v284
        %484 = vmatmul.mubr.bf16.gmra.mrb[0].mxu0 %v283
        %v485 = vpop.f32.mrb[0].mxu0
        %v486 = vadd.f32 0.0, %v485
        %v487 = vpop.f32.mrb[0].mxu0
        %v488 = vpop.f32.mrb[0].mxu0
        %v489 = vadd.f32 0.0, %v488
        %v490 = vpop.f32.mrb[0].mxu0
        %491 = vmatprep.mubr.bf16.mxu0 %v286
        %492 = vmatmul.mubr.bf16.gmra.mrb[0].mxu0 %v285
        %v493 = vpop.f32.mrb[0].mxu0
        %v494 = vadd.f32 0.0, %v493
        %v495 = vpop.f32.mrb[0].mxu0
        %v496 = vpop.f32.mrb[0].mxu0
        %v497 = vadd.f32 0.0, %v496
        %v498 = vpop.f32.mrb[0].mxu0
        %499 = vmatprep.mubr.bf16.mxu0 %v288
        %500 = vmatmul.mubr.bf16.gmra.mrb[0].mxu0 %v287
        %v501 = vpop.f32.mrb[0].mxu0
        %v502 = vadd.f32 0.0, %v501
        %v503 = vpop.f32.mrb[0].mxu0
        %v504 = vpop.f32.mrb[0].mxu0
        %v505 = vadd.f32 0.0, %v504
        %v506 = vpop.f32.mrb[0].mxu0
        %507 = vmatprep.mubr.bf16.mxu0 %v290
        %508 = vmatmul.mubr.bf16.gmra.mrb[0].mxu0 %v289
        %v509 = vpop.f32.mrb[0].mxu0
        %v510 = vadd.f32 0.0, %v509
        %v511 = vpop.f32.mrb[0].mxu0
        %v512 = vpop.f32.mrb[0].mxu0
        %v513 = vadd.f32 0.0, %v512
        %v514 = vpop.f32.mrb[0].mxu0
        %515 = vdwg.mxu0
        %v516 = vld [vmem:[%s263] sm:$0xff]
        %v517 = vld [vmem:[%s263 + $0x8] sm:$0xff]
        %v518 = vld [vmem:[%s263 + $0x10] sm:$0xff]
        %v519 = vld [vmem:[%s263 + $0x18] sm:$0xff]
        %v520 = vld [vmem:[%s263 + $0x20] sm:$0xff]
        %v521 = vld [vmem:[%s263 + $0x28] sm:$0xff]
        %v522 = vld [vmem:[%s263 + $0x30] sm:$0xff]
        %v523 = vld [vmem:[%s263 + $0x38] sm:$0xff]
        %v524 = vld [vmem:[%s263 + $0x40] sm:$0xff]
        %v525 = vld [vmem:[%s263 + $0x48] sm:$0xff]
        %v526 = vld [vmem:[%s263 + $0x50] sm:$0xff]
        %v527 = vld [vmem:[%s263 + $0x58] sm:$0xff]
        %v528 = vld [vmem:[%s263 + $0x60] sm:$0xff]
        %v529 = vld [vmem:[%s263 + $0x68] sm:$0xff]
        %v530 = vld [vmem:[%s263 + $0x70] sm:$0xff]
        %v531 = vld [vmem:[%s263 + $0x78] sm:$0xff]
        %533 = vset.pattern.permute.xlu0 0
        %534 = vperm.xlu0 %533, %v516
        %v535 = vpop.permute.xlu0 %534
        %538 = vset.pattern.permute.xlu0 0
        %539 = vperm.xlu0 %538, %v517
        %v540 = vpop.permute.xlu0 %539
        %543 = vset.pattern.permute.xlu0 0
        %544 = vperm.xlu0 %543, %v518
        %v545 = vpop.permute.xlu0 %544
        %548 = vset.pattern.permute.xlu0 0
        %549 = vperm.xlu0 %548, %v519
        %v550 = vpop.permute.xlu0 %549
        %553 = vset.pattern.permute.xlu0 0
        %554 = vperm.xlu0 %553, %v520
        %v555 = vpop.permute.xlu0 %554
        %558 = vset.pattern.permute.xlu0 0
        %559 = vperm.xlu0 %558, %v521
        %v560 = vpop.permute.xlu0 %559
        %563 = vset.pattern.permute.xlu0 0
        %564 = vperm.xlu0 %563, %v522
        %v565 = vpop.permute.xlu0 %564
        %568 = vset.pattern.permute.xlu0 0
        %569 = vperm.xlu0 %568, %v523
        %v570 = vpop.permute.xlu0 %569
        %573 = vset.pattern.permute.xlu0 0
        %574 = vperm.xlu0 %573, %v524
        %v575 = vpop.permute.xlu0 %574
        %578 = vset.pattern.permute.xlu0 0
        %579 = vperm.xlu0 %578, %v525
        %v580 = vpop.permute.xlu0 %579
        %583 = vset.pattern.permute.xlu0 0
        %584 = vperm.xlu0 %583, %v526
        %v585 = vpop.permute.xlu0 %584
        %588 = vset.pattern.permute.xlu0 0
        %589 = vperm.xlu0 %588, %v527
        %v590 = vpop.permute.xlu0 %589
        %593 = vset.pattern.permute.xlu0 0
        %594 = vperm.xlu0 %593, %v528
        %v595 = vpop.permute.xlu0 %594
        %598 = vset.pattern.permute.xlu0 0
        %599 = vperm.xlu0 %598, %v529
        %v600 = vpop.permute.xlu0 %599
        %603 = vset.pattern.permute.xlu0 0
        %604 = vperm.xlu0 %603, %v530
        %v605 = vpop.permute.xlu0 %604
        %608 = vset.pattern.permute.xlu0 0
        %609 = vperm.xlu0 %608, %v531
        %v610 = vpop.permute.xlu0 %609
        %v612 = vmul.f32 %v454, %v535
        %v613 = vmul.f32 %v457, %v540
        %v614 = vmul.f32 %v462, %v545
        %v615 = vmul.f32 %v465, %v550
        %v616 = vmul.f32 %v470, %v555
        %v617 = vmul.f32 %v473, %v560
        %v618 = vmul.f32 %v478, %v565
        %v619 = vmul.f32 %v481, %v570
        %v620 = vmul.f32 %v486, %v575
        %v621 = vmul.f32 %v489, %v580
        %v622 = vmul.f32 %v494, %v585
        %v623 = vmul.f32 %v497, %v590
        %v624 = vmul.f32 %v502, %v595
        %v625 = vmul.f32 %v505, %v600
        %v626 = vmul.f32 %v510, %v605
        %v627 = vmul.f32 %v513, %v610
        %v628 = vpack.c.bf16 %v613, %v612
        %v629 = vpack.c.bf16 %v615, %v614
        %v630 = vpack.c.bf16 %v617, %v616
        %v631 = vpack.c.bf16 %v619, %v618
        %v632 = vpack.c.bf16 %v621, %v620
        %v633 = vpack.c.bf16 %v623, %v622
        %v634 = vpack.c.bf16 %v625, %v624
        %v635 = vpack.c.bf16 %v627, %v626
        %v636 = vld [vmem:[#allocation2] sm:$0xf]
        %v637 = vld [vmem:[#allocation2 + $0x4] sm:$0xf]
        %v638 = vld [vmem:[#allocation2 + $0x8] sm:$0xf]
        %v639 = vld [vmem:[#allocation2 + $0xc] sm:$0xf]
        %v640 = vld [vmem:[#allocation2 + $0x10] sm:$0xf]
        %v641 = vld [vmem:[#allocation2 + $0x14] sm:$0xf]
        %v642 = vld [vmem:[#allocation2 + $0x18] sm:$0xf]
        %v643 = vld [vmem:[#allocation2 + $0x1c] sm:$0xf]
        %v644 = vld [vmem:[#allocation2 + $0x20] sm:$0xf]
        %v645 = vld [vmem:[#allocation2 + $0x24] sm:$0xf]
        %v646 = vld [vmem:[#allocation2 + $0x28] sm:$0xf]
        %v647 = vld [vmem:[#allocation2 + $0x2c] sm:$0xf]
        %v648 = vld [vmem:[#allocation2 + $0x30] sm:$0xf]
        %v649 = vld [vmem:[#allocation2 + $0x34] sm:$0xf]
        %v650 = vld [vmem:[#allocation2 + $0x38] sm:$0xf]
        %v651 = vld [vmem:[#allocation2 + $0x3c] sm:$0xf]
        %v652 = vld [vmem:[%s4] sm:$0x1]
        %v654 = vlaneseq
        %v655 = vshrl.u32 %v654, 7
        %v656 = vsub.s32 0, %v655
        %v657 = vrot.slane %v652, %v656
        %v675 = vunpack.c.l.b16 %v636
        %v676 = vunpack.c.l.b16 %v637
        %v677 = vunpack.c.l.b16 %v638
        %v678 = vunpack.c.l.b16 %v639
        %v679 = vunpack.c.l.b16 %v640
        %v680 = vunpack.c.l.b16 %v641
        %v681 = vunpack.c.l.b16 %v642
        %v682 = vunpack.c.l.b16 %v643
        %v683 = vunpack.c.l.b16 %v644
        %v684 = vunpack.c.l.b16 %v645
        %v685 = vunpack.c.l.b16 %v646
        %v686 = vunpack.c.l.b16 %v647
        %v687 = vunpack.c.l.b16 %v648
        %v688 = vunpack.c.l.b16 %v649
        %v689 = vunpack.c.l.b16 %v650
        %v690 = vunpack.c.l.b16 %v651
        %v691 = vpack.c.b16 %v676, %v675
        %v692 = vpack.c.b16 %v678, %v677
        %v693 = vpack.c.b16 %v680, %v679
        %v694 = vpack.c.b16 %v682, %v681
        %v695 = vpack.c.b16 %v684, %v683
        %v696 = vpack.c.b16 %v686, %v685
        %v697 = vpack.c.b16 %v688, %v687
        %v698 = vpack.c.b16 %v690, %v689
        %707 = vmatprep.subr.bf16.mxu0 0
        %708 = vmatpush1.bf16.msra.mxu0 %v691
        %709 = vmatprep.subr.bf16.mxu0 0
        %710 = vmatpush1.bf16.msra.mxu0 %v692
        %711 = vmatprep.subr.bf16.mxu0 0
        %712 = vmatpush1.bf16.msra.mxu0 %v693
        %713 = vmatprep.subr.bf16.mxu0 0
        %714 = vmatpush1.bf16.msra.mxu0 %v694
        %715 = vmatprep.subr.bf16.mxu0 0
        %716 = vmatpush1.bf16.msra.mxu0 %v695
        %717 = vmatprep.subr.bf16.mxu0 0
        %718 = vmatpush1.bf16.msra.mxu0 %v696
        %719 = vmatprep.subr.bf16.mxu0 0
        %720 = vmatpush1.bf16.msra.mxu0 %v697
        %721 = vmatprep.subr.bf16.mxu0 0
        %722 = vmatpush1.bf16.msra.mxu0 %v698
        %723 = vmatprep.subr.bf16.mxu0 0
        %724 = vmatpush1.bf16.msra.mxu0 0
        %725 = vmatprep.subr.bf16.mxu0 0
        %726 = vmatpush1.bf16.msra.mxu0 0
        %727 = vmatprep.subr.bf16.mxu0 0
        %728 = vmatpush1.bf16.msra.mxu0 0
        %729 = vmatprep.subr.bf16.mxu0 0
        %730 = vmatpush1.bf16.msra.mxu0 0
        %731 = vmatprep.subr.bf16.mxu0 0
        %732 = vmatpush1.bf16.msra.mxu0 0
        %733 = vmatprep.subr.bf16.mxu0 0
        %734 = vmatpush1.bf16.msra.mxu0 0
        %735 = vmatprep.subr.bf16.mxu0 0
        %736 = vmatpush1.bf16.msra.mxu0 0
        %737 = vmatprep.subr.bf16.mxu0 0
        %738 = vmatpush1.bf16.msra.mxu0 0
        %739 = vmatprep.mubr.bf16.mxu0 0
        %740 = vmatmul.mubr.bf16.gmra.mrb[0].mxu0 %v628
        %v741 = vpop.f32.mrb[0].mxu0
        %v742 = vadd.f32 %v657, %v741
        %v743 = vpop.f32.mrb[0].mxu0
        %v744 = vpop.f32.mrb[0].mxu0
        %v745 = vadd.f32 %v657, %v744
        %v746 = vpop.f32.mrb[0].mxu0
        %747 = vmatprep.mubr.bf16.mxu0 0
        %748 = vmatmul.mubr.bf16.gmra.mrb[0].mxu0 %v629
        %v749 = vpop.f32.mrb[0].mxu0
        %v750 = vadd.f32 %v657, %v749
        %v751 = vpop.f32.mrb[0].mxu0
        %v752 = vpop.f32.mrb[0].mxu0
        %v753 = vadd.f32 %v657, %v752
        %v754 = vpop.f32.mrb[0].mxu0
        %755 = vmatprep.mubr.bf16.mxu0 0
        %756 = vmatmul.mubr.bf16.gmra.mrb[0].mxu0 %v630
        %v757 = vpop.f32.mrb[0].mxu0
        %v758 = vadd.f32 %v657, %v757
        %v759 = vpop.f32.mrb[0].mxu0
        %v760 = vpop.f32.mrb[0].mxu0
        %v761 = vadd.f32 %v657, %v760
        %v762 = vpop.f32.mrb[0].mxu0
        %763 = vmatprep.mubr.bf16.mxu0 0
        %764 = vmatmul.mubr.bf16.gmra.mrb[0].mxu0 %v631
        %v765 = vpop.f32.mrb[0].mxu0
        %v766 = vadd.f32 %v657, %v765
        %v767 = vpop.f32.mrb[0].mxu0
        %v768 = vpop.f32.mrb[0].mxu0
        %v769 = vadd.f32 %v657, %v768
        %v770 = vpop.f32.mrb[0].mxu0
        %771 = vmatprep.mubr.bf16.mxu0 0
        %772 = vmatmul.mubr.bf16.gmra.mrb[0].mxu0 %v632
        %v773 = vpop.f32.mrb[0].mxu0
        %v774 = vadd.f32 %v657, %v773
        %v775 = vpop.f32.mrb[0].mxu0
        %v776 = vpop.f32.mrb[0].mxu0
        %v777 = vadd.f32 %v657, %v776
        %v778 = vpop.f32.mrb[0].mxu0
        %779 = vmatprep.mubr.bf16.mxu0 0
        %780 = vmatmul.mubr.bf16.gmra.mrb[0].mxu0 %v633
        %v781 = vpop.f32.mrb[0].mxu0
        %v782 = vadd.f32 %v657, %v781
        %v783 = vpop.f32.mrb[0].mxu0
        %v784 = vpop.f32.mrb[0].mxu0
        %v785 = vadd.f32 %v657, %v784
        %v786 = vpop.f32.mrb[0].mxu0
        %787 = vmatprep.mubr.bf16.mxu0 0
        %788 = vmatmul.mubr.bf16.gmra.mrb[0].mxu0 %v634
        %v789 = vpop.f32.mrb[0].mxu0
        %v790 = vadd.f32 %v657, %v789
        %v791 = vpop.f32.mrb[0].mxu0
        %v792 = vpop.f32.mrb[0].mxu0
        %v793 = vadd.f32 %v657, %v792
        %v794 = vpop.f32.mrb[0].mxu0
        %795 = vmatprep.mubr.bf16.mxu0 0
        %796 = vmatmul.mubr.bf16.gmra.mrb[0].mxu0 %v635
        %v797 = vpop.f32.mrb[0].mxu0
        %v798 = vadd.f32 %v657, %v797
        %v799 = vpop.f32.mrb[0].mxu0
        %v800 = vpop.f32.mrb[0].mxu0
        %v801 = vadd.f32 %v657, %v800
        %v802 = vpop.f32.mrb[0].mxu0
        %803 = vdwg.mxu0
        %v804 = vmax.f32 %v742, 0.0
        %v805 = vmax.f32 %v745, 0.0
        %v806 = vmax.f32 %v750, 0.0
        %v807 = vmax.f32 %v753, 0.0
        %v808 = vmax.f32 %v758, 0.0
        %v809 = vmax.f32 %v761, 0.0
        %v810 = vmax.f32 %v766, 0.0
        %v811 = vmax.f32 %v769, 0.0
        %v812 = vmax.f32 %v774, 0.0
        %v813 = vmax.f32 %v777, 0.0
        %v814 = vmax.f32 %v782, 0.0
        %v815 = vmax.f32 %v785, 0.0
        %v816 = vmax.f32 %v790, 0.0
        %v817 = vmax.f32 %v793, 0.0
        %v818 = vmax.f32 %v798, 0.0
        %v819 = vmax.f32 %v801, 0.0
        %v820 = vpack.c.bf16 %v805, %v804
        %v821 = vpack.c.bf16 %v807, %v806
        %v822 = vpack.c.bf16 %v809, %v808
        %v823 = vpack.c.bf16 %v811, %v810
        %v824 = vpack.c.bf16 %v813, %v812
        %v825 = vpack.c.bf16 %v815, %v814
        %v826 = vpack.c.bf16 %v817, %v816
        %v827 = vpack.c.bf16 %v819, %v818
        %v836 = vunpack.c.l.b16 %v820
        %v837 = vunpack.c.h.b16 %v820
        %v838 = vunpack.c.l.b16 %v821
        %v839 = vunpack.c.h.b16 %v821
        %v840 = vunpack.c.l.b16 %v822
        %v841 = vunpack.c.h.b16 %v822
        %v842 = vunpack.c.l.b16 %v823
        %v843 = vunpack.c.h.b16 %v823
        %v844 = vunpack.c.l.b16 %v824
        %v845 = vunpack.c.h.b16 %v824
        %v846 = vunpack.c.l.b16 %v825
        %v847 = vunpack.c.h.b16 %v825
        %v848 = vunpack.c.l.b16 %v826
        %v849 = vunpack.c.h.b16 %v826
        %v850 = vunpack.c.l.b16 %v827
        %v851 = vunpack.c.h.b16 %v827
        %v852 = vpack.c.b16 %v836, %v836
        %v853 = vpack.c.b16 %v837, %v837
        %v854 = vpack.c.b16 %v838, %v838
        %v855 = vpack.c.b16 %v839, %v839
        %v856 = vpack.c.b16 %v840, %v840
        %v857 = vpack.c.b16 %v841, %v841
        %v858 = vpack.c.b16 %v842, %v842
        %v859 = vpack.c.b16 %v843, %v843
        %v860 = vpack.c.b16 %v844, %v844
        %v861 = vpack.c.b16 %v845, %v845
        %v862 = vpack.c.b16 %v846, %v846
        %v863 = vpack.c.b16 %v847, %v847
        %v864 = vpack.c.b16 %v848, %v848
        %v865 = vpack.c.b16 %v849, %v849
        %v866 = vpack.c.b16 %v850, %v850
        %v867 = vpack.c.b16 %v851, %v851
        %884 = vst [vmem:[%s251] sm:$0xf] %v852
        %885 = vst [vmem:[%s251 + $0x4] sm:$0xf] %v853
        %886 = vst [vmem:[%s251 + $0x8] sm:$0xf] %v854
        %887 = vst [vmem:[%s251 + $0xc] sm:$0xf] %v855
        %888 = vst [vmem:[%s251 + $0x10] sm:$0xf] %v856
        %889 = vst [vmem:[%s251 + $0x14] sm:$0xf] %v857
        %890 = vst [vmem:[%s251 + $0x18] sm:$0xf] %v858
        %891 = vst [vmem:[%s251 + $0x1c] sm:$0xf] %v859
        %892 = vst [vmem:[%s251 + $0x20] sm:$0xf] %v860
        %893 = vst [vmem:[%s251 + $0x24] sm:$0xf] %v861
        %894 = vst [vmem:[%s251 + $0x28] sm:$0xf] %v862
        %895 = vst [vmem:[%s251 + $0x2c] sm:$0xf] %v863
        %896 = vst [vmem:[%s251 + $0x30] sm:$0xf] %v864
        %897 = vst [vmem:[%s251 + $0x34] sm:$0xf] %v865
        %898 = vst [vmem:[%s251 + $0x38] sm:$0xf] %v866
        %899 = vst [vmem:[%s251 + $0x3c] sm:$0xf] %v867
        %s900 = sand.u32 %s143, 1
        %s901 = scalar_lea.sflag [#allocation4], %s900
        %s902 = sand.u32 %s143, 1
        %s903 = smul.addr %s902, 64
        %s904 = scalar_lea.vmem [#allocation5], %s903
        // Predicated region
        $region45: #{tpu_custom_call.1} parent=39 // pred_check
          %p905 = pneg %p153
        $region46: #{tpu_custom_call.1} parent=39 // pred_check_branch
          %907 = sbr.rel (%p905) target = $region48
        $region47: #{tpu_custom_call.1} parent=39 // pred_region
          %s908 = smul.u32 16, %s20
          %s910 = ssub.s32 1024, 1024
          %911 = vsyncadd %s901, %s910
          %s912 = smul.addr %s908, 64
          %s913 = scalar_lea.hbm %s5, %s912
          %s914 = sshll.u32 %s904, 4
          %s915 = int_to_ptr.vmem [resolvable:$true] %s914
          %920 = dma.vmem_to_hbm [thread:$0]  %s915, 1024, %s913, %s901, 64, 64, 4
        $region48: #{tpu_custom_call.1} parent=39 // pred_fallthru
          _
      $region40: #{tpu_custom_call.1} parent=5 // pred_fallthru
        _
      %p921 = scmp.le.s32.totalorder 2, %s15
      // Predicated region
      $region49: #{tpu_custom_call.1} parent=5 // pred_check
        %p922 = pneg %p921
      $region50: #{tpu_custom_call.1} parent=5 // pred_check_branch
        %924 = sbr.rel (%p922) target = $region52
      $region51: #{tpu_custom_call.1} parent=5 // pred_region
        %s925 = ssub.s32 %s15, 2
        // Predicated region
        $region53: #{tpu_custom_call.1} parent=51 // pred_check
          %p926 = pneg %p159
        $region54: #{tpu_custom_call.1} parent=51 // pred_check_branch
          %928 = sbr.rel (%p926) target = $region56
        $region55: #{tpu_custom_call.1} parent=51 // pred_region
          %s929 = sand.u32 %s144, 1
          %s930 = scalar_lea.sflag [#allocation4], %s929
          %s931 = sand.u32 %s144, 1
          %s932 = smul.addr %s931, 64
          %s933 = scalar_lea.vmem [#allocation5], %s932
          %934 = dma.done %s930, 1024
        $region56: #{tpu_custom_call.1} parent=51 // pred_fallthru
          _
      $region52: #{tpu_custom_call.1} parent=5 // pred_fallthru
        _
    $region6: #{tpu_custom_call.1} parent=1 // loop_footer
      %s19 = sadd.s32 1, %s15
    $region7: #{tpu_custom_call.1} parent=1 // loop_footer_branch
      %14 = sbr.rel target = $region3
    $region8: #{tpu_custom_call.1} parent=1 // loop_exit
      _
    %935 = vsyncpa [#allocation3], 1
    %s936 = scalar_lea.sflag [#allocation3], 1
    %937 = vsyncpa %s936, 1
    %938 = vsyncpa [#allocation4], 1
    %s939 = scalar_lea.sflag [#allocation4], 1
    %940 = vsyncpa %s939, 1

</llo_original>
